<compile_context>
chip_gen: v6e
topology: v6e:2x2x1
jax: 0.10.0
libtpu: 0.0.40
codegen_flags: <defaults>
</compile_context>

<pallas_src>
import functools

import jax
import jax.numpy as jnp
from jax.experimental import pallas as pl
from jax.experimental.pallas import tpu as pltpu

INPUT_SIZE = 13
N_HIDDEN = 128
BN_EPS = 1e-5
PARAM_ROWS = INPUT_SIZE + 3          # 13 rows of W^T + bias + scale + shift = 16
DEFAULT_TILE_M = 4096                # rows per grid step; multiple of 8
_MIN_SPLIT_ROWS = 1024               # min rows per tile when splitting for 2 TCs
_VMEM_LIMIT_BYTES = 32 * 1024 * 1024 # explicit scoped-VMEM budget (fits all gens)


def _linear_relu_bn_kernel(x_ref, wp_ref, o_ref):
    # x_ref: (TILE_M, 13)
    # wp_ref: (16, 128) resident; rows [0:13]=W^T, 13=bias, 14=scale, 15=shift
    # o_ref: (TILE_M, 128)
    x = x_ref[...]
    wp = wp_ref[...]
    w = wp[0:INPUT_SIZE, :]
    b = wp[INPUT_SIZE:INPUT_SIZE + 1, :]
    scale = wp[INPUT_SIZE + 1:INPUT_SIZE + 2, :]
    shift = wp[INPUT_SIZE + 2:INPUT_SIZE + 3, :]
    y = jnp.dot(x, w, preferred_element_type=jnp.float32) + b
    y = jnp.maximum(y, 0.0)                          # ReLU
    # f32 epilogue math; single converting store (cheap on all generations).
    o_ref[...] = (y * scale + shift).astype(o_ref.dtype)


def fold_params(w, b, gamma, beta, running_mean, running_var,
                dtype=jnp.float32):
    """Hoisted, call-once param prep: W^T + folded BatchNorm, one (16,128) buf.

    Use dtype=jnp.bfloat16 together with bf16 x to halve input-side traffic
    (MXU still accumulates in f32).
    """
    scale = gamma / jnp.sqrt(running_var + BN_EPS)            # (128,)
    shift = beta - running_mean * scale                       # (128,)
    wt = jnp.asarray(w, jnp.float32).T                        # (13, 128)
    merged = jnp.concatenate(
        [wt, b[None, :], scale[None, :], shift[None, :]], axis=0)  # (16, 128)
    return merged.astype(dtype)


def _round_up(x, m):
    return pl.cdiv(x, m) * m


@functools.partial(jax.jit, static_argnames=("tile_m", "out_dtype"))
def linear_forward(x, wp, *, tile_m=DEFAULT_TILE_M, out_dtype=None):
    """Forward pass of the `Linear` module (eval semantics).

    x: (..., 13) — flattened to (N, 13) like `input.view(-1, 13)`, fed in its
       native dtype (no extra HBM up-cast pass).
    wp: (16, 128) merged params from fold_params().
    out_dtype: defaults to x.dtype; pass jnp.bfloat16 to halve output traffic.
    """
    # TODO(synk): Dropout is implemented as eval-mode identity (no masking).
    x2d = x.reshape(-1, INPUT_SIZE)
    n = x2d.shape[0]
    odt = jnp.dtype(out_dtype) if out_dtype is not None else x2d.dtype

    # Row tile: multiple of 8 (sublane), capped by problem size. For large N,
    # cap at ceil(N/2) so the parallel grid has >= 2 steps (both v7x TCs lit).
    tm = min(tile_m, _round_up(n, 8))
    if n >= 2 * _MIN_SPLIT_ROWS:
        tm = min(tm, _round_up(pl.cdiv(n, 2), 8))

    grid = (pl.cdiv(n, tm),)  # ragged last block: Pallas clips OOB stores
    out = pl.pallas_call(
        _linear_relu_bn_kernel,
        out_shape=jax.ShapeDtypeStruct((n, N_HIDDEN), odt),
        grid_spec=pltpu.PrefetchScalarGridSpec(
            num_scalar_prefetch=0,
            grid=grid,
            in_specs=[
                pl.BlockSpec((tm, INPUT_SIZE), lambda i: (i, 0)),
                pl.BlockSpec((PARAM_ROWS, N_HIDDEN), lambda i: (0, 0)),
            ],
            out_specs=pl.BlockSpec((tm, N_HIDDEN), lambda i: (i, 0)),
        ),
        compiler_params=pltpu.CompilerParams(
            # Row tiles are independent -> shard across TCs on v7x megacore.
            dimension_semantics=("parallel",),
            vmem_limit_bytes=_VMEM_LIMIT_BYTES,
        ),
    )(x2d, wp)
    return out


def _reference(x, w, b, gamma, beta, running_mean, running_var):
    x2d = x.reshape(-1, INPUT_SIZE).astype(jnp.float32)
    y = x2d @ w.T + b
    y = jnp.maximum(y, 0.0)
    return (y - running_mean) / jnp.sqrt(running_var + BN_EPS) * gamma + beta


if __name__ == "__main__":
    key = jax.random.PRNGKey(0)
    k_x, k_w, k_b, k_g, k_be, k_rm, k_rv, k_x2 = jax.random.split(key, 8)

    # Parameters with shapes from nn.Linear(13,128) + nn.BatchNorm1d(128).
    w = jax.random.normal(k_w, (N_HIDDEN, INPUT_SIZE), jnp.float32) * 0.1
    b = jax.random.normal(k_b, (N_HIDDEN,), jnp.float32) * 0.1
    gamma = 1.0 + 0.1 * jax.random.normal(k_g, (N_HIDDEN,), jnp.float32)
    beta = 0.1 * jax.random.normal(k_be, (N_HIDDEN,), jnp.float32)
    running_mean = 0.1 * jax.random.normal(k_rm, (N_HIDDEN,), jnp.float32)
    running_var = jnp.abs(
        1.0 + 0.1 * jax.random.normal(k_rv, (N_HIDDEN,), jnp.float32))

    # Hoisted once (module-init-time) param fold.
    wp = fold_params(w, b, gamma, beta, running_mean, running_var)

    # Small input consistent with the module: (batch=2, seq=8, 13) -> (16, 13).
    x = jax.random.normal(k_x, (2, 8, INPUT_SIZE), jnp.float32)
    out = jax.block_until_ready(linear_forward(x, wp))
    ref = _reference(x, w, b, gamma, beta, running_mean, running_var)
    assert out.shape == (16, N_HIDDEN) and out.dtype == jnp.float32
    assert jnp.allclose(out, ref, atol=1e-4, rtol=1e-4), "mismatch (small)"

    # Multi-step grid + ragged last block (2800 rows, tm=512 -> 6 steps,
    # last block only 240 valid rows; Pallas clips the OOB stores).
    x_big = jax.random.normal(k_x2, (4, 700, INPUT_SIZE), jnp.float32)
    out_big = jax.block_until_ready(linear_forward(x_big, wp, tile_m=512))
    ref_big = _reference(x_big, w, b, gamma, beta, running_mean, running_var)
    assert out_big.shape == (2800, N_HIDDEN)
    assert jnp.allclose(out_big, ref_big, atol=1e-4, rtol=1e-4), \
        "mismatch (tiled/ragged)"

    # Default big-tile path (>=2-step split for the v7x parallel axis).
    out_big2 = jax.block_until_ready(linear_forward(x_big, wp))
    assert jnp.allclose(out_big2, ref_big, atol=1e-4, rtol=1e-4), \
        "mismatch (split)"

    # Optional bf16-output path (halves the dominant output write traffic).
    out_bf16 = jax.block_until_ready(
        linear_forward(x_big, wp, out_dtype=jnp.bfloat16))
    assert out_bf16.dtype == jnp.bfloat16
    assert jnp.allclose(out_bf16.astype(jnp.float32), ref_big,
                        atol=3e-2, rtol=3e-2), "mismatch (bf16 out)"

    print("KERNEL_OK")
</pallas_src>

<mosaic_0001>
module attributes {stable_mosaic.version = 11 : i64} {
  func.func @_linear_relu_bn_kernel(%arg0: i32, %arg1: memref<16x13xf32, #tpu.memory_space<vmem>>, %arg2: memref<16x128xf32, #tpu.memory_space<vmem>>, %arg3: memref<16x128xf32, #tpu.memory_space<vmem>>) attributes {dimension_semantics = [#tpu.dimension_semantics<parallel>], iteration_bounds = array<i64: 1>, scalar_prefetch = 0 : i64, scratch_operands = 0 : i64, tpu.core_type = #tpu.core_type<tc>, window_params = [{transform_indices = @transform_0, window_bounds = array<i64: 16, 13>}, {pipeline_mode = #tpu.pipeline_mode<synchronous>, transform_indices = @transform_1, window_bounds = array<i64: 16, 128>}, {transform_indices = @transform_2, window_bounds = array<i64: 16, 128>}]} {
    %c0 = arith.constant 0 : index
    %c0_0 = arith.constant 0 : index
    %0 = vector.load %arg1[%c0, %c0_0] : memref<16x13xf32, #tpu.memory_space<vmem>>, vector<16x13xf32>
    %c0_1 = arith.constant 0 : index
    %c0_2 = arith.constant 0 : index
    %1 = vector.load %arg2[%c0_1, %c0_2] : memref<16x128xf32, #tpu.memory_space<vmem>>, vector<16x128xf32>
    %2 = vector.extract_strided_slice %1 {offsets = [0, 0], sizes = [13, 128], strides = [1, 1]} : vector<16x128xf32> to vector<13x128xf32>
    %3 = vector.extract_strided_slice %1 {offsets = [13, 0], sizes = [1, 128], strides = [1, 1]} : vector<16x128xf32> to vector<1x128xf32>
    %4 = vector.extract_strided_slice %1 {offsets = [14, 0], sizes = [1, 128], strides = [1, 1]} : vector<16x128xf32> to vector<1x128xf32>
    %5 = vector.extract_strided_slice %1 {offsets = [15, 0], sizes = [1, 128], strides = [1, 1]} : vector<16x128xf32> to vector<1x128xf32>
    %cst = arith.constant dense<0.000000e+00> : vector<16x128xf32>
    %6 = tpu.matmul %0, %2, %cst {dimension_numbers = #tpu.dot_dimension_numbers<[1], [0], [0], [1], [0, 0, 1, 1], [], []>} : vector<16x13xf32>, vector<13x128xf32>, vector<16x128xf32> -> vector<16x128xf32>
    %7 = vector.broadcast %3 : vector<1x128xf32> to vector<16x128xf32>
    %8 = arith.addf %6, %7 : vector<16x128xf32>
    %cst_3 = arith.constant 0.000000e+00 : f32
    %9 = vector.broadcast %cst_3 : f32 to vector<16x128xf32>
    %10 = arith.maximumf %8, %9 : vector<16x128xf32>
    %11 = vector.broadcast %4 : vector<1x128xf32> to vector<16x128xf32>
    %12 = arith.mulf %10, %11 : vector<16x128xf32>
    %13 = vector.broadcast %5 : vector<1x128xf32> to vector<16x128xf32>
    %14 = arith.addf %12, %13 : vector<16x128xf32>
    %c0_4 = arith.constant 0 : index
    %c0_5 = arith.constant 0 : index
    %15 = vector.load %arg3[%c0_4, %c0_5] : memref<16x128xf32, #tpu.memory_space<vmem>>, vector<16x128xf32>
    tpu.vector_store %arg3[%c0_4, %c0_5], %14 {strides = array<i32>} : memref<16x128xf32, #tpu.memory_space<vmem>>, vector<16x128xf32>,
    return
  }
  func.func @transform_0(%arg0: i32) -> (i32, i32) {
    %c0_i32 = arith.constant 0 : i32
    %c0_i32_0 = arith.constant 0 : i32
    return %arg0, %c0_i32 : i32, i32
  }
  func.func @transform_1(%arg0: i32) -> (i32, i32) {
    %c0_i32 = arith.constant 0 : i32
    %c0_i32_0 = arith.constant 0 : i32
    %c0_i32_1 = arith.constant 0 : i32
    return %c0_i32, %c0_i32_0 : i32, i32
  }
  func.func @transform_2(%arg0: i32) -> (i32, i32) {
    %c0_i32 = arith.constant 0 : i32
    %c0_i32_0 = arith.constant 0 : i32
    return %arg0, %c0_i32 : i32, i32
  }
}

</mosaic_0001>

<llo_original>
// kernel: linear_forward.1
$region0: #{linear_forward.1}
  #allocation0 [shape = 'u32[]', space=smem, size = 0x4, offset = 0x4, fixed_abs, tag = 'smem constant byte address 0x4 - core index']
  #allocation1 [shape = 'u32[144,128]{1,0:T(1,128)}', space=vmem, size = 0x12000, scoped, tag = 'internal scratch']
  %s0 = inlined_call_operand.hbm [shape: f32[16,13], index: 0, kind: input, shape index: {}]
  %s1 = inlined_call_operand.hbm [shape: f32[16,128], index: 1, kind: input, shape index: {}]
  %s2 = inlined_call_operand.hbm [shape: f32[16,128], index: 2, kind: output, shape index: {}]
  %s3 = sld [smem:[#allocation0]]
  $region26: #{linear_forward.1} parent=0
    _
  %s5 = ssub.s32 1, %s3
  %s6 = scalar_select 0, %s5, %s3
  $region1: #{linear_forward.1} parent=0
    #allocation2 [shape = 'u8[8192]{0}', space=vmem, size = 0x2000, scoped, tag = 'input window, operand 0, single buffered']
    #allocation3 [shape = 's32[1]{0}', space=sflag, size = 0x4, scoped, tag = 'scoped memory for linear_forward.1']
    #allocation4 [shape = 's32[1]{0}', space=sflag, size = 0x4, scoped, tag = 'scoped memory for linear_forward.1']
    #allocation5 [shape = 'u8[8192]{0}', space=vmem, size = 0x2000, scoped, tag = 'input window, operand 1, single buffered']
    #allocation6 [shape = 's32[1]{0}', space=sflag, size = 0x4, scoped, tag = 'scoped memory for linear_forward.1']
    #allocation7 [shape = 'u8[8192]{0}', space=vmem, size = 0x2000, scoped, tag = 'output window, operand 0, single buffered']
    %7 = vsyncpa [#allocation3], 0
    %8 = vsyncpa [#allocation6], 0
    %9 = vsyncpa [#allocation4], 0
    // Predicated region
    $region2: #{linear_forward.1} parent=1 // pred_check
      _
    $region3: #{linear_forward.1} parent=1 // pred_check_branch
      %11 = sbr.rel (0) target = $region5
    $region4: #{linear_forward.1} parent=1 // pred_region
      %s13 = ssub.s32 256, 256
      %14 = vsyncadd [#allocation3], %s13
      %s15 = sshll.u32 [#allocation2], 4
      %s16 = int_to_ptr.vmem [resolvable:$true] %s15
      %21 = dma.hbm_to_vmem [thread:$0]  %s0, 256, %s16, [#allocation3], 128, 128, 8
    $region5: #{linear_forward.1} parent=1 // pred_fallthru
      _
    // Predicated region
    $region6: #{linear_forward.1} parent=1 // pred_check
      _
    $region7: #{linear_forward.1} parent=1 // pred_check_branch
      %23 = sbr.rel (0) target = $region9
    $region8: #{linear_forward.1} parent=1 // pred_region
      %s25 = ssub.s32 256, 256
      %26 = vsyncadd [#allocation6], %s25
      %s27 = sshll.u32 [#allocation5], 4
      %s28 = int_to_ptr.vmem [resolvable:$true] %s27
      %33 = dma.hbm_to_vmem [thread:$0]  %s1, 256, %s28, [#allocation6], 128, 128, 8
    $region9: #{linear_forward.1} parent=1 // pred_fallthru
      _
    // Predicated region
    $region10: #{linear_forward.1} parent=1 // pred_check
      _
    $region11: #{linear_forward.1} parent=1 // pred_check_branch
      %35 = sbr.rel (0) target = $region13
    $region12: #{linear_forward.1} parent=1 // pred_region
      %36 = dma.done [#allocation3], 256
    $region13: #{linear_forward.1} parent=1 // pred_fallthru
      _
    // Predicated region
    $region14: #{linear_forward.1} parent=1 // pred_check
      _
    $region15: #{linear_forward.1} parent=1 // pred_check_branch
      %38 = sbr.rel (0) target = $region17
    $region16: #{linear_forward.1} parent=1 // pred_region
      %39 = dma.done [#allocation6], 256
    $region17: #{linear_forward.1} parent=1 // pred_fallthru
      _
    %v40 = vld [vmem:[#allocation2] sm:$0xff]
    %v41 = vld [vmem:[#allocation2 + $0x8] sm:$0xff]
    %v42 = vld [vmem:[#allocation5] sm:$0xff]
    %v43 = vld [vmem:[#allocation5 + $0x8] sm:$0xff]
    %v44 = vlaneseq
    %v45 = vshrl.u32 %v44, 7
    %v46 = vsub.s32 5, %v45
    %v47 = vrot.slane %v43, %v46
    %vm48 = vcmask 105472
    %v50 = vsel %vm48, %v40, 0
    %v53 = vsel %vm48, %v41, 0
    %vm55 = vcmask 1044480
    %v57 = vsel %vm55, %v43, 0
    %59 = vmatprep.subr.mxu0 0.0
    %60 = vmatpush1.msra.mxu0 0.0
    %61 = vmatprep.subr.mxu0 0.0
    %62 = vmatpush1.msra.mxu0 0.0
    %63 = vmatprep.subr.mxu0 0.0
    %64 = vmatpush1.msra.mxu0 0.0
    %65 = vmatprep.subr.mxu0 0.0
    %66 = vmatpush1.msra.mxu0 0.0
    %67 = vmatprep.subr.mxu0 0.0
    %68 = vmatpush1.msra.mxu0 0.0
    %69 = vmatprep.subr.mxu0 0.0
    %70 = vmatpush1.msra.mxu0 0.0
    %71 = vmatprep.subr.mxu0 0.0
    %72 = vmatpush1.msra.mxu0 0.0
    %73 = vmatprep.subr.mxu0 0.0
    %74 = vmatpush1.msra.mxu0 0.0
    %75 = vmatprep.subr.mxu0 0.0
    %76 = vmatpush1.msra.mxu0 0.0
    %77 = vmatprep.subr.mxu0 0.0
    %78 = vmatpush1.msra.mxu0 0.0
    %79 = vmatprep.subr.mxu0 0.0
    %80 = vmatpush1.msra.mxu0 0.0
    %81 = vmatprep.subr.mxu0 0.0
    %82 = vmatpush1.msra.mxu0 0.0
    %83 = vmatprep.subr.mxu0 0.0
    %84 = vmatpush1.msra.mxu0 0.0
    %85 = vmatprep.subr.mxu0 0.0
    %86 = vmatpush1.msra.mxu0 0.0
    %87 = vmatprep.subr.mxu0 0.0
    %88 = vmatpush1.msra.mxu0 %v57
    %89 = vmatprep.subr.mxu0 0.0
    %90 = vmatpush1.msra.mxu0 %v42
    %91 = vmatprep.subr.mxu0 0.0
    %92 = vmatpush2.msra.mxu0 0.0
    %93 = vmatprep.subr.mxu0 0.0
    %94 = vmatpush2.msra.mxu0 0.0
    %95 = vmatprep.subr.mxu0 0.0
    %96 = vmatpush2.msra.mxu0 0.0
    %97 = vmatprep.subr.mxu0 0.0
    %98 = vmatpush2.msra.mxu0 0.0
    %99 = vmatprep.subr.mxu0 0.0
    %100 = vmatpush2.msra.mxu0 0.0
    %101 = vmatprep.subr.mxu0 0.0
    %102 = vmatpush2.msra.mxu0 0.0
    %103 = vmatprep.subr.mxu0 0.0
    %104 = vmatpush2.msra.mxu0 0.0
    %105 = vmatprep.subr.mxu0 0.0
    %106 = vmatpush2.msra.mxu0 0.0
    %107 = vmatprep.subr.mxu0 0.0
    %108 = vmatpush2.msra.mxu0 0.0
    %109 = vmatprep.subr.mxu0 0.0
    %110 = vmatpush2.msra.mxu0 0.0
    %111 = vmatprep.subr.mxu0 0.0
    %112 = vmatpush2.msra.mxu0 0.0
    %113 = vmatprep.subr.mxu0 0.0
    %114 = vmatpush2.msra.mxu0 0.0
    %115 = vmatprep.subr.mxu0 0.0
    %116 = vmatpush2.msra.mxu0 0.0
    %117 = vmatprep.subr.mxu0 0.0
    %118 = vmatpush2.msra.mxu0 0.0
    %119 = vmatprep.subr.mxu0 0.0
    %120 = vmatpush2.msra.mxu0 0.0
    %121 = vmatprep.subr.mxu0 0.0
    %122 = vmatpush2.msra.mxu0 0.0
    %123 = vmatprep.mubr.f32.mxu0 0.0
    %124 = vmatmul.mubr.f32.gmra.mxu0 %v50
    %v125 = vpop.f32.mrf.mxu0
    %v126 = vadd.f32 %v47, %v125
    %v127 = vpop.f32.mrf.mxu0
    %128 = vmatprep.mubr.f32.mxu0 0.0
    %129 = vmatmul.mubr.f32.gmra.mxu0 %v53
    %v130 = vpop.f32.mrf.mxu0
    %v131 = vadd.f32 %v47, %v130
    %v132 = vpop.f32.mrf.mxu0
    %133 = vdwg.mxu0
    %v134 = vmax.f32 %v126, 0.0
    %v135 = vmax.f32 %v131, 0.0
    %v136 = vlaneseq
    %v137 = vshrl.u32 %v136, 7
    %v138 = vsub.s32 6, %v137
    %v139 = vrot.slane %v43, %v138
    %v140 = vmul.f32 %v134, %v139
    %v141 = vmul.f32 %v135, %v139
    %v142 = vlaneseq
    %v143 = vshrl.u32 %v142, 7
    %v144 = vsub.s32 7, %v143
    %v145 = vrot.slane %v43, %v144
    %v146 = vadd.f32 %v140, %v145
    %v147 = vadd.f32 %v141, %v145
    %148 = vst [vmem:[#allocation7] sm:$0xff] %v146
    %149 = vst [vmem:[#allocation7 + $0x8] sm:$0xff] %v147
    // Predicated region
    $region18: #{linear_forward.1} parent=1 // pred_check
      _
    $region19: #{linear_forward.1} parent=1 // pred_check_branch
      %151 = sbr.rel (0) target = $region21
    $region20: #{linear_forward.1} parent=1 // pred_region
      %s153 = ssub.s32 256, 256
      %154 = vsyncadd [#allocation4], %s153
      %s155 = sshll.u32 [#allocation7], 4
      %s156 = int_to_ptr.vmem [resolvable:$true] %s155
      %161 = dma.vmem_to_hbm [thread:$0]  %s156, 256, %s2, [#allocation4], 128, 128, 8
    $region21: #{linear_forward.1} parent=1 // pred_fallthru
      _
    // Predicated region
    $region22: #{linear_forward.1} parent=1 // pred_check
      _
    $region23: #{linear_forward.1} parent=1 // pred_check_branch
      %163 = sbr.rel (0) target = $region25
    $region24: #{linear_forward.1} parent=1 // pred_region
      %164 = dma.done [#allocation4], 256
    $region25: #{linear_forward.1} parent=1 // pred_fallthru
      _
    %165 = vsyncpa [#allocation3], 1
    %166 = vsyncpa [#allocation6], 1
    %167 = vsyncpa [#allocation4], 1

</llo_original>
